<compile_context>
chip_gen: v5e
topology: v5e:2x2
jax: 0.10.0
libtpu: 0.0.40
codegen_flags: <defaults>
</compile_context>

<pallas_src>
import functools

import jax
import jax.numpy as jnp
from jax.experimental import pallas as pl
from jax.experimental.pallas import tpu as pltpu

LANE = 128      # vreg lane width
SUBLANE = 8     # vreg sublane count (f32)


def _round_up(x, m):
    return (x + m - 1) // m * m


def _chip_defaults():
    """Generation-tuned (batch_tile, epilogue_dtype)."""
    try:
        kind = jax.devices()[0].device_kind.lower()
    except Exception:  # pragma: no cover - defensive
        kind = ""
    if "v7" in kind:
        # 3.2 TB/s HBM: bigger tiles + >=2 grid steps to engage both TCs.
        return 4096, jnp.bfloat16
    if "v6" in kind:
        return 2048, jnp.bfloat16
    # v5e / older: no bf16 VPU -> f32 epilogue; cap tile (slower HBM, 1 vst slot).
    return 2048, jnp.float32


def mlp_kernel(x_ref, w1_ref, b1_ref, w2_ref, b2_ref, o_ref, *, epilogue_dtype):
    # x:  (Bt, D_in) f32/bf16   w1: (D_in, Hp) bf16    b1: (1, Hp)    f32
    # w2: (Hp, D_out) bf16      b2: (1, D_out) f32     o:  (Bt, D_out) f32
    x = x_ref[...].astype(jnp.bfloat16)                 # no-op if x already bf16
    h = jnp.dot(x, w1_ref[...], preferred_element_type=jnp.float32)
    # Epilogue (bias + ReLU) in bf16 on v6e/v7x (bf16 VALU), f32 on v5e.
    h = h.astype(epilogue_dtype) + b1_ref[...].astype(epilogue_dtype)
    h = jnp.maximum(h, 0.0)
    out = jnp.dot(h.astype(jnp.bfloat16), w2_ref[...],
                  preferred_element_type=jnp.float32)
    out = out + b2_ref[...]
    o_ref[...] = out.astype(o_ref.dtype)


def prepare_params(w1, b1, w2, b2):
    """One-time conversion of PyTorch-convention params.

    w1: (H, D_in), b1: (H,), w2: (D_out, H), b2: (D_out,).

    Invariant (required for correctness of the hidden-dim padding): the padded
    hidden columns of w1_t / b1_p and the padded hidden rows of w2_p are
    EXACTLY zero, so those columns produce relu(0*x + 0) = 0 and contribute
    nothing to the second matmul.  The output dim is NOT padded: the second
    matmul emits only the D_out useful columns, which removes the padded f32
    writeback and the wrapper slice.
    """
    H, D_in = w1.shape
    D_out = w2.shape[0]
    Hp = _round_up(H, LANE)

    w1_t = jnp.zeros((D_in, Hp), jnp.bfloat16).at[:, :H].set(
        w1.T.astype(jnp.bfloat16))
    b1_p = jnp.zeros((1, Hp), jnp.float32).at[:, :H].set(b1.astype(jnp.float32))
    w2_p = jnp.zeros((Hp, D_out), jnp.bfloat16).at[:H, :].set(
        w2.T.astype(jnp.bfloat16))
    b2_p = b2.astype(jnp.float32).reshape(1, D_out)
    return w1_t, b1_p, w2_p, b2_p, (D_in, H, D_out)


def simple_nn_forward(x, params, *, batch_tile=None, gridless_max_batch=512):
    """x: (B, D_in) f32 (or bf16). Returns (B, D_out) f32."""
    w1_t, b1_p, w2_p, b2_p, (D_in, H, D_out) = params
    B = x.shape[0]
    Hp = w1_t.shape[1]

    default_tile, epilogue_dtype = _chip_defaults()
    if batch_tile is None:
        batch_tile = default_tile
    assert batch_tile % SUBLANE == 0, "batch_tile must be a multiple of 8"

    kernel = functools.partial(mlp_kernel, epilogue_dtype=epilogue_dtype)

    flops = 2 * B * D_in * Hp + 2 * B * Hp * D_out
    bytes_accessed = (x.size * x.dtype.itemsize
                      + w1_t.size * 2 + w2_p.size * 2
                      + b1_p.size * 4 + b2_p.size * 4
                      + B * D_out * 4)
    cost = pl.CostEstimate(flops=flops, transcendentals=0,
                           bytes_accessed=bytes_accessed)

    out_shape = jax.ShapeDtypeStruct((B, D_out), jnp.float32)

    if B <= gridless_max_batch:
        # Tiny problem: fully overhead-bound -> skip grid/pipeline machinery.
        # Whole-array blocks (full dims are always legal) resident in VMEM.
        return pl.pallas_call(
            kernel,
            out_shape=out_shape,
            cost_estimate=cost,
        )(x, w1_t, b1_p, w2_p, b2_p)

    # Larger batch: tile only the batch axis.  No wrapper pad/slice -- Pallas
    # handles the ragged last tile (OOB reads are don't-care, OOB writes are
    # masked; safe because there is no cross-row reduction).  Weights/biases
    # map to block (0, 0) for every grid step, so they stay VMEM-resident and
    # the only steady-state DMA is x in / out out.  "parallel" lets the grid
    # shard across the 2 TensorCores on v7x.
    grid = (pl.cdiv(B, batch_tile),)
    return pl.pallas_call(
        kernel,
        out_shape=out_shape,
        grid_spec=pl.GridSpec(
            grid=grid,
            in_specs=[
                pl.BlockSpec((batch_tile, D_in), lambda i: (i, 0)),
                pl.BlockSpec((D_in, Hp), lambda i: (0, 0)),
                pl.BlockSpec((1, Hp), lambda i: (0, 0)),
                pl.BlockSpec((Hp, D_out), lambda i: (0, 0)),
                pl.BlockSpec((1, D_out), lambda i: (0, 0)),
            ],
            out_specs=pl.BlockSpec((batch_tile, D_out), lambda i: (i, 0)),
        ),
        compiler_params=pltpu.CompilerParams(
            dimension_semantics=("parallel",),
            # Comfortable even on v7x's 64 MiB per-TC VMEM; harmless elsewhere.
            vmem_limit_bytes=48 * 1024 * 1024,
        ),
        cost_estimate=cost,
    )(x, w1_t, b1_p, w2_p, b2_p)


def init_params(key, input_size, hidden_size, output_size):
    # Deterministic init mimicking nn.Linear's U(-1/sqrt(fan_in), 1/sqrt(fan_in)).
    k1, k2, k3, k4 = jax.random.split(key, 4)
    bound1 = 1.0 / jnp.sqrt(input_size)
    bound2 = 1.0 / jnp.sqrt(hidden_size)
    w1 = jax.random.uniform(k1, (hidden_size, input_size), jnp.float32, -bound1, bound1)
    b1 = jax.random.uniform(k2, (hidden_size,), jnp.float32, -bound1, bound1)
    w2 = jax.random.uniform(k3, (output_size, hidden_size), jnp.float32, -bound2, bound2)
    b2 = jax.random.uniform(k4, (output_size,), jnp.float32, -bound2, bound2)
    return w1, b1, w2, b2


if __name__ == "__main__":
    input_size, hidden_size, output_size = 32, 64, 16
    batch = 8

    key = jax.random.PRNGKey(0)
    kx, kp = jax.random.split(key)
    x = jax.random.normal(kx, (batch, input_size), jnp.float32)
    w1, b1, w2, b2 = init_params(kp, input_size, hidden_size, output_size)

    # One-time parameter preparation (transpose / pad hidden dim / bf16 cast).
    params = prepare_params(w1, b1, w2, b2)

    # Small-batch (gridless) path.
    out = simple_nn_forward(x, params)
    jax.block_until_ready(out)
    ref = jnp.maximum(x @ w1.T + b1, 0.0) @ w2.T + b2
    assert out.shape == (batch, output_size)
    # bf16 MXU operands with f32 accumulation -> loosened tolerance vs f32 ref.
    assert jnp.allclose(out, ref, atol=5e-2, rtol=5e-2)

    # Exercise the batch-tiled grid path, including a ragged last tile
    # (B=300 with batch_tile=128 -> grid of 3, last tile 44 rows, no padding).
    xb = jax.random.normal(jax.random.PRNGKey(1), (300, input_size), jnp.float32)
    outb = simple_nn_forward(xb, params, batch_tile=128, gridless_max_batch=0)
    jax.block_until_ready(outb)
    refb = jnp.maximum(xb @ w1.T + b1, 0.0) @ w2.T + b2
    assert outb.shape == (300, output_size)
    assert jnp.allclose(outb, refb, atol=5e-2, rtol=5e-2)

    print("KERNEL_OK")
</pallas_src>

<mosaic_0001>
module attributes {stable_mosaic.version = 11 : i64} {
  func.func @mlp_kernel(%arg0: memref<8x32xf32, #tpu.memory_space<vmem>>, %arg1: memref<32x128xbf16, #tpu.memory_space<vmem>>, %arg2: memref<1x128xf32, #tpu.memory_space<vmem>>, %arg3: memref<128x16xbf16, #tpu.memory_space<vmem>>, %arg4: memref<1x16xf32, #tpu.memory_space<vmem>>, %arg5: memref<8x16xf32, #tpu.memory_space<vmem>>) attributes {dimension_semantics = [], scalar_prefetch = 0 : i64, scratch_operands = 0 : i64, tpu.core_type = #tpu.core_type<tc>} {
    %c0 = arith.constant 0 : index
    %c0_0 = arith.constant 0 : index
    %0 = vector.load %arg0[%c0, %c0_0] : memref<8x32xf32, #tpu.memory_space<vmem>>, vector<8x32xf32>
    %1 = arith.truncf %0 : vector<8x32xf32> to vector<8x32xbf16>
    %c0_1 = arith.constant 0 : index
    %c0_2 = arith.constant 0 : index
    %2 = vector.load %arg1[%c0_1, %c0_2] : memref<32x128xbf16, #tpu.memory_space<vmem>>, vector<32x128xbf16>
    %cst = arith.constant dense<0.000000e+00> : vector<8x128xf32>
    %3 = tpu.matmul %1, %2, %cst {dimension_numbers = #tpu.dot_dimension_numbers<[1], [0], [0], [1], [0, 0, 1, 1], [], []>} : vector<8x32xbf16>, vector<32x128xbf16>, vector<8x128xf32> -> vector<8x128xf32>
    %c0_3 = arith.constant 0 : index
    %c0_4 = arith.constant 0 : index
    %4 = vector.load %arg2[%c0_3, %c0_4] : memref<1x128xf32, #tpu.memory_space<vmem>>, vector<1x128xf32>
    %5 = vector.broadcast %4 : vector<1x128xf32> to vector<8x128xf32>
    %6 = arith.addf %3, %5 : vector<8x128xf32>
    %cst_5 = arith.constant 0.000000e+00 : f32
    %7 = vector.broadcast %cst_5 : f32 to vector<8x128xf32>
    %8 = arith.maximumf %6, %7 : vector<8x128xf32>
    %9 = arith.truncf %8 : vector<8x128xf32> to vector<8x128xbf16>
    %c0_6 = arith.constant 0 : index
    %c0_7 = arith.constant 0 : index
    %10 = vector.load %arg3[%c0_6, %c0_7] : memref<128x16xbf16, #tpu.memory_space<vmem>>, vector<128x16xbf16>
    %cst_8 = arith.constant dense<0.000000e+00> : vector<8x16xf32>
    %11 = tpu.matmul %9, %10, %cst_8 {dimension_numbers = #tpu.dot_dimension_numbers<[1], [0], [0], [1], [0, 0, 1, 1], [], []>} : vector<8x128xbf16>, vector<128x16xbf16>, vector<8x16xf32> -> vector<8x16xf32>
    %c0_9 = arith.constant 0 : index
    %c0_10 = arith.constant 0 : index
    %12 = vector.load %arg4[%c0_9, %c0_10] : memref<1x16xf32, #tpu.memory_space<vmem>>, vector<1x16xf32>
    %13 = vector.broadcast %12 : vector<1x16xf32> to vector<8x16xf32>
    %14 = arith.addf %11, %13 : vector<8x16xf32>
    %c0_11 = arith.constant 0 : index
    %c0_12 = arith.constant 0 : index
    %15 = vector.load %arg5[%c0_11, %c0_12] : memref<8x16xf32, #tpu.memory_space<vmem>>, vector<8x16xf32>
    tpu.vector_store %arg5[%c0_11, %c0_12], %14 {strides = array<i32>} : memref<8x16xf32, #tpu.memory_space<vmem>>, vector<8x16xf32>,
    return
  }
}

</mosaic_0001>

<llo_original>
// kernel: tpu_custom_call.1
$region0: #{tpu_custom_call.1}
  #allocation0 [shape = 'u32[]', space=smem, size = 0x4, offset = 0x4, fixed_abs, tag = 'smem constant byte address 0x4 - core index']
  #allocation1 [shape = 'u32[72,128]{1,0:T(1,128)}', space=vmem, size = 0x9000, scoped, tag = 'internal scratch']
  %s0 = inlined_call_operand.vmem [shape: f32[8,32], index: 0, kind: input, shape index: {}]
  %s1 = inlined_call_operand.vmem [shape: bf16[32,128], index: 1, kind: input, shape index: {}]
  %s2 = inlined_call_operand.vmem [shape: f32[1,128], index: 2, kind: input, shape index: {}]
  %s3 = inlined_call_operand.vmem [shape: bf16[128,16], index: 3, kind: input, shape index: {}]
  %s4 = inlined_call_operand.vmem [shape: f32[1,16], index: 4, kind: input, shape index: {}]
  %s5 = inlined_call_operand.hbm [shape: f32[8,16], index: 5, kind: output, shape index: {}]
  %s6 = sld [smem:[#allocation0]]
  $region30: #{tpu_custom_call.1} parent=0
    _
  %s8 = ssub.s32 1, %s6
  %s9 = scalar_select 0, %s8, %s6
  $region1: #{tpu_custom_call.1} parent=0
    #allocation2 [shape = 'u8[4096]{0}', space=vmem, size = 0x1000, scoped, tag = 'output window, operand 0, single buffered']
    #allocation3 [shape = 's32[1]{0}', space=sflag, size = 0x4, scoped, tag = 'scoped memory for tpu_custom_call.1']
    %10 = vsyncpa [#allocation3], 0
    // Predicated region
    $region2: #{tpu_custom_call.1} parent=1 // pred_check
      _
    $region3: #{tpu_custom_call.1} parent=1 // pred_check_branch
      %12 = sbr.rel (0) target = $region5
    $region4: #{tpu_custom_call.1} parent=1 // pred_region
      _
    $region5: #{tpu_custom_call.1} parent=1 // pred_fallthru
      _
    // Predicated region
    $region6: #{tpu_custom_call.1} parent=1 // pred_check
      _
    $region7: #{tpu_custom_call.1} parent=1 // pred_check_branch
      %14 = sbr.rel (0) target = $region9
    $region8: #{tpu_custom_call.1} parent=1 // pred_region
      _
    $region9: #{tpu_custom_call.1} parent=1 // pred_fallthru
      _
    // Predicated region
    $region10: #{tpu_custom_call.1} parent=1 // pred_check
      _
    $region11: #{tpu_custom_call.1} parent=1 // pred_check_branch
      %16 = sbr.rel (0) target = $region13
    $region12: #{tpu_custom_call.1} parent=1 // pred_region
      _
    $region13: #{tpu_custom_call.1} parent=1 // pred_fallthru
      _
    // Predicated region
    $region14: #{tpu_custom_call.1} parent=1 // pred_check
      _
    $region15: #{tpu_custom_call.1} parent=1 // pred_check_branch
      %18 = sbr.rel (0) target = $region17
    $region16: #{tpu_custom_call.1} parent=1 // pred_region
      _
    $region17: #{tpu_custom_call.1} parent=1 // pred_fallthru
      _
    // Predicated region
    $region18: #{tpu_custom_call.1} parent=1 // pred_check
      _
    $region19: #{tpu_custom_call.1} parent=1 // pred_check_branch
      %20 = sbr.rel (0) target = $region21
    $region20: #{tpu_custom_call.1} parent=1 // pred_region
      _
    $region21: #{tpu_custom_call.1} parent=1 // pred_fallthru
      _
    %v22 = vld [vmem:[%s0] sm:$0xff]
    %v23 = vpack.c.bf16 %v22, %v22
    %v24 = vld [vmem:[%s1] sm:$0xf]
    %v25 = vld [vmem:[%s1 + $0x4] sm:$0xf]
    %v26 = vld [vmem:[%s1 + $0x8] sm:$0xf]
    %v27 = vld [vmem:[%s1 + $0xc] sm:$0xf]
    %v28 = vld [vmem:[%s2] sm:$0x1]
    %v30 = vperm.slane %v28, 0
    %v36 = vunpack.c.l.b16 %v24
    %v37 = vunpack.c.l.b16 %v25
    %v38 = vunpack.c.l.b16 %v26
    %v39 = vunpack.c.l.b16 %v27
    %v40 = vpack.c.b16 %v37, %v36
    %v41 = vpack.c.b16 %v39, %v38
    %vm44 = vcmask 261120
    %v46 = vsel %vm44, %v23, 0
    %48 = vmatpush.bf16.msra.mxu0 0
    %49 = vmatpush.bf16.msra.mxu0 0
    %50 = vmatpush.bf16.msra.mxu0 0
    %51 = vmatpush.bf16.msra.mxu0 0
    %52 = vmatpush.bf16.msra.mxu0 0
    %53 = vmatpush.bf16.msra.mxu0 0
    %54 = vmatpush.bf16.msra.mxu0 %v41
    %55 = vmatpush.bf16.msra.mxu0 %v40
    %56 = vmatmul.bf16.gmra.mxu0 %v46
    %v57 = vpop.f32.mrf.mxu0
    %v58 = vadd.f32 %v30, %v57
    %v59 = vpop.f32.mrf.mxu0
    %60 = vdwg.mxu0
    %v61 = vmax.f32 %v58, 0.0
    %v62 = vpack.c.bf16 %v61, %v61
    %v63 = vld [vmem:[%s3] sm:$0xf]
    %v64 = vld [vmem:[%s3 + $0x4] sm:$0xf]
    %v65 = vld [vmem:[%s3 + $0x8] sm:$0xf]
    %v66 = vld [vmem:[%s3 + $0xc] sm:$0xf]
    %v67 = vld [vmem:[%s3 + $0x10] sm:$0xf]
    %v68 = vld [vmem:[%s3 + $0x14] sm:$0xf]
    %v69 = vld [vmem:[%s3 + $0x18] sm:$0xf]
    %v70 = vld [vmem:[%s3 + $0x1c] sm:$0xf]
    %v71 = vld [vmem:[%s3 + $0x20] sm:$0xf]
    %v72 = vld [vmem:[%s3 + $0x24] sm:$0xf]
    %v73 = vld [vmem:[%s3 + $0x28] sm:$0xf]
    %v74 = vld [vmem:[%s3 + $0x2c] sm:$0xf]
    %v75 = vld [vmem:[%s3 + $0x30] sm:$0xf]
    %v76 = vld [vmem:[%s3 + $0x34] sm:$0xf]
    %v77 = vld [vmem:[%s3 + $0x38] sm:$0xf]
    %v78 = vld [vmem:[%s3 + $0x3c] sm:$0xf]
    %v79 = vld [vmem:[%s4] sm:$0x1]
    %v81 = vperm.slane %v79, 0
    %v99 = vunpack.c.l.b16 %v63
    %v100 = vunpack.c.l.b16 %v64
    %v101 = vunpack.c.l.b16 %v65
    %v102 = vunpack.c.l.b16 %v66
    %v103 = vunpack.c.l.b16 %v67
    %v104 = vunpack.c.l.b16 %v68
    %v105 = vunpack.c.l.b16 %v69
    %v106 = vunpack.c.l.b16 %v70
    %v107 = vunpack.c.l.b16 %v71
    %v108 = vunpack.c.l.b16 %v72
    %v109 = vunpack.c.l.b16 %v73
    %v110 = vunpack.c.l.b16 %v74
    %v111 = vunpack.c.l.b16 %v75
    %v112 = vunpack.c.l.b16 %v76
    %v113 = vunpack.c.l.b16 %v77
    %v114 = vunpack.c.l.b16 %v78
    %v115 = vpack.c.b16 %v100, %v99
    %v116 = vpack.c.b16 %v102, %v101
    %v117 = vpack.c.b16 %v104, %v103
    %v118 = vpack.c.b16 %v106, %v105
    %v119 = vpack.c.b16 %v108, %v107
    %v120 = vpack.c.b16 %v110, %v109
    %v121 = vpack.c.b16 %v112, %v111
    %v122 = vpack.c.b16 %v114, %v113
    %131 = vmatpush.bf16.msra.mxu0 %v122
    %132 = vmatpush.bf16.msra.mxu0 %v121
    %133 = vmatpush.bf16.msra.mxu0 %v120
    %134 = vmatpush.bf16.msra.mxu0 %v119
    %135 = vmatpush.bf16.msra.mxu0 %v118
    %136 = vmatpush.bf16.msra.mxu0 %v117
    %137 = vmatpush.bf16.msra.mxu0 %v116
    %138 = vmatpush.bf16.msra.mxu0 %v115
    %139 = vmatmul.bf16.gmra.mxu0 %v62
    %v140 = vpop.f32.mrf.mxu0
    %v141 = vadd.f32 %v81, %v140
    %v142 = vpop.f32.mrf.mxu0
    %143 = vdwg.mxu0
    %vm144 = vcmask 130048
    %145 = vst.msk [vmem:[#allocation2] sm:$0xff] %vm144, %v141
    // Predicated region
    $region22: #{tpu_custom_call.1} parent=1 // pred_check
      _
    $region23: #{tpu_custom_call.1} parent=1 // pred_check_branch
      %147 = sbr.rel (0) target = $region25
    $region24: #{tpu_custom_call.1} parent=1 // pred_region
      %149 = vsyncadd [#allocation3], 0
      %s151 = sshll.u32 [#allocation2], 4
      %s152 = int_to_ptr.vmem [resolvable:$true] %s151
      %s153 = sshll.u32 %s5, 4
      %s154 = int_to_ptr.hbm [resolvable:$true] %s153
      %156 = dma.vmem_to_hbm [thread:$0]  %s152, 128, %s154, [#allocation3]
    $region25: #{tpu_custom_call.1} parent=1 // pred_fallthru
      _
    // Predicated region
    $region26: #{tpu_custom_call.1} parent=1 // pred_check
      _
    $region27: #{tpu_custom_call.1} parent=1 // pred_check_branch
      %158 = sbr.rel (0) target = $region29
    $region28: #{tpu_custom_call.1} parent=1 // pred_region
      %160 = dma.done [#allocation3], 128
    $region29: #{tpu_custom_call.1} parent=1 // pred_fallthru
      _
    %161 = vsyncpa [#allocation3], 1

</llo_original>
